<compile_context>
chip_gen: v6e
topology: v6e:2x2x1
jax: 0.10.0
libtpu: 0.0.40
codegen_flags: <defaults>
</compile_context>

<pallas_src>
import jax
import jax.numpy as jnp
from jax.experimental import pallas as pl
from jax.experimental.pallas import tpu as pltpu


def _round_up(x, m):
    return (x + m - 1) // m * m


def _choose_tiles(H, W, Wp, Cin_p, dil, window_budget_bytes=4 * 1024 * 1024):
    """Pick (row groups per image, rows per group, rows per row-tile)."""
    # Split rows into two independent groups when cleanly possible so both
    # grid axes can be 'parallel' (keeps both v7x TensorCores busy for N=1).
    if H % 2 == 0 and ((H // 2) * W) % 8 == 0:
        nsplit = 2
    else:
        nsplit = 1
    rows_g = H // nsplit
    # Largest row tile TH that divides rows_g, keeps in-block output stores
    # sublane aligned, and whose double-buffered input window stays well
    # inside the scoped-VMEM budget on every TPU generation (v5e 16 MiB
    # default, v7x 64 MiB physical).
    th = rows_g
    for cand in range(rows_g, 0, -1):
        if rows_g % cand or (cand * W) % 8:
            continue
        th = cand
        if 2 * (cand + 2 * dil) * Wp * Cin_p * 4 <= window_budget_bytes:
            break
    return nsplit, rows_g, th


def _make_dsconv_kernel(W, Cin_p, dil, rows_g, th, nt):
    win = th + 2 * dil  # input rows needed per row tile (incl. halo)

    def kernel(x_hbm, wdw_ref, shift_ref, wpw_ref, o_ref, xbuf, sem):
        # x_hbm:     (N, Hp, Wp, Cin_p)  padded NHWC input, raw HBM ref
        # wdw_ref:   (3, 3, Cin_p)       depthwise weights, BN scale folded in
        # shift_ref: (1, Cin_p)          folded BN shift
        # wpw_ref:   (Cin_p, Cout_p)     pointwise weights (bf16)
        # o_ref:     (1, rows_g*W, Cout_p) lane-dense output block
        # xbuf:      (2, win, Wp, Cin_p) VMEM double buffer;  sem: 2 DMA sems
        n = pl.program_id(0)
        g = pl.program_id(1)
        row0 = g * rows_g  # first output row handled by this grid step

        def issue(t, slot):
            start = row0 + t * th  # window start inside the padded input
            pltpu.make_async_copy(
                x_hbm.at[n, pl.ds(start, win)], xbuf.at[slot],
                sem.at[slot]).start()

        def wait(slot):
            pltpu.make_async_copy(
                x_hbm.at[0, pl.ds(0, win)], xbuf.at[slot],
                sem.at[slot]).wait()

        # Hoist the (tiny) weight loads out of the row-tile loop.
        wtap = wdw_ref[...]        # (3, 3, Cin_p) f32
        shift = shift_ref[0, :]    # (Cin_p,)      f32
        wpw = wpw_ref[...]         # (Cin_p, Cout_p) bf16

        issue(0, 0)
        for t in range(nt):        # static unroll; nt is small by construction
            slot = t % 2
            wait(slot)
            if t + 1 < nt:
                issue(t + 1, 1 - slot)   # prefetch next window during compute

            # Depthwise 3x3 dilated conv, unrolled over the 9 taps.
            # All tap arithmetic stays in f32 (no per-tap casts).
            acc = jnp.zeros((th, W, Cin_p), jnp.float32)
            for kh in range(3):
                for kw in range(3):
                    # TODO(synk): the W-axis (sublane) slice at offset kw*dil
                    # may lower to a shifted load; revisit with pltpu.roll if
                    # the bundle dump shows this phase ld/st-bound.
                    patch = xbuf[slot,
                                 kh * dil:kh * dil + th,
                                 kw * dil:kw * dil + W, :]
                    acc = acc + patch * wtap[kh, kw, :]

            # Folded BatchNorm shift + ReLU, then bf16 operands for the MXU.
            y = jnp.maximum(acc + shift, 0.0).astype(jnp.bfloat16)
            out = jnp.dot(y.reshape(th * W, Cin_p), wpw,
                          preferred_element_type=jnp.float32)
            o_ref[0, t * th * W:(t + 1) * th * W, :] = out.astype(o_ref.dtype)

    return kernel


def dsconv_pallas(x_nchw, w_dw, gamma, beta, run_mean, run_var, w_pw,
                  atrous_rate=1, eps=1e-5):
    """x_nchw: (N, Cin, H, W) f32.  w_dw: (Cin,1,3,3).  w_pw: (Cout,Cin,1,1).
    Returns (N, Cout, H, W) f32."""
    N, Cin, H, W = x_nchw.shape
    Cout = w_pw.shape[0]
    d = int(atrous_rate)
    Cin_p = _round_up(Cin, 128)
    Cout_p = _round_up(Cout, 128)
    Hp, Wp = H + 2 * d, W + 2 * d

    # --- single wrapper-side preprocessing pass over the activations -------
    # NCHW -> NHWC, pad channels to lane width and the spatial dims by the
    # dilation (the conv's 'same' padding).  XLA fuses transpose+pad.
    x = jnp.transpose(x_nchw, (0, 2, 3, 1))
    x_pad = jnp.pad(x, ((0, 0), (d, d), (d, d), (0, Cin_p - Cin)))

    # --- weights / folded BatchNorm (eval mode) -----------------------------
    inv_std = 1.0 / jnp.sqrt(run_var + eps)
    scale = gamma * inv_std                                    # (Cin,)
    shift = beta - run_mean * scale                            # (Cin,)
    wdw = jnp.transpose(w_dw[:, 0, :, :], (1, 2, 0)) * scale   # (3,3,Cin), scale folded
    wdw = jnp.pad(wdw, ((0, 0), (0, 0), (0, Cin_p - Cin)))
    shift_p = jnp.pad(shift, (0, Cin_p - Cin)).reshape(1, Cin_p)
    wpw = jnp.transpose(w_pw[:, :, 0, 0], (1, 0))              # (Cin, Cout)
    wpw = jnp.pad(wpw, ((0, Cin_p - Cin), (0, Cout_p - Cout))).astype(jnp.bfloat16)

    nsplit, rows_g, th = _choose_tiles(H, W, Wp, Cin_p, d)
    nt = rows_g // th

    kernel = _make_dsconv_kernel(W=W, Cin_p=Cin_p, dil=d,
                                 rows_g=rows_g, th=th, nt=nt)

    out_flat = pl.pallas_call(
        kernel,
        out_shape=jax.ShapeDtypeStruct((N, H * W, Cout_p), jnp.float32),
        grid_spec=pltpu.PrefetchScalarGridSpec(
            num_scalar_prefetch=0,
            grid=(N, nsplit),
            in_specs=[
                pl.BlockSpec(memory_space=pl.ANY),                       # x (HBM)
                pl.BlockSpec((3, 3, Cin_p), lambda n, g: (0, 0, 0)),     # wdw
                pl.BlockSpec((1, Cin_p), lambda n, g: (0, 0)),           # shift
                pl.BlockSpec((Cin_p, Cout_p), lambda n, g: (0, 0)),      # wpw
            ],
            out_specs=pl.BlockSpec((1, rows_g * W, Cout_p),
                                   lambda n, g: (n, g, 0)),
            scratch_shapes=[
                pltpu.VMEM((2, th + 2 * d, Wp, Cin_p), jnp.float32),
                pltpu.SemaphoreType.DMA((2,)),
            ]),
        compiler_params=pltpu.CompilerParams(
            dimension_semantics=("parallel", "parallel"),
            # Explicit scoped-VMEM budget: above v5e's 16 MiB default, below
            # v7x's 64 MiB physical.
            vmem_limit_bytes=48 * 1024 * 1024),
    )(x_pad, wdw, shift_p, wpw)

    out = out_flat.reshape(N, H, W, Cout_p)[..., :Cout]
    # TODO(synk): keep activations NHWC end-to-end at the model level to drop
    # this output transpose (a full HBM pass for a bandwidth-bound op).
    return jnp.transpose(out, (0, 3, 1, 2))


def dsconv_reference(x_nchw, w_dw, gamma, beta, run_mean, run_var, w_pw,
                     atrous_rate=1, eps=1e-5):
    """Pure-JAX (lax.conv) reference for correctness checking."""
    N, Cin, H, W = x_nchw.shape
    d = atrous_rate
    x = jnp.transpose(x_nchw, (0, 2, 3, 1))                        # NHWC
    wdw_hwio = jnp.transpose(w_dw, (2, 3, 1, 0))                   # (3,3,1,Cin)
    y = jax.lax.conv_general_dilated(
        x, wdw_hwio, window_strides=(1, 1), padding=((d, d), (d, d)),
        rhs_dilation=(d, d), dimension_numbers=("NHWC", "HWIO", "NHWC"),
        feature_group_count=Cin)
    y = (y - run_mean) / jnp.sqrt(run_var + eps) * gamma + beta
    y = jnp.maximum(y, 0.0)
    wpw = jnp.transpose(w_pw[:, :, 0, 0], (1, 0))                  # (Cin, Cout)
    out = jnp.einsum("nhwc,cd->nhwd", y, wpw)
    return jnp.transpose(out, (0, 3, 1, 2))


if __name__ == "__main__":
    key = jax.random.PRNGKey(0)
    k_x, k_dw, k_pw, k_g, k_b, k_m, k_v = jax.random.split(key, 7)

    N, Cin, Cout, H, W = 2, 4, 8, 16, 16
    atrous_rate = 2

    x = jax.random.normal(k_x, (N, Cin, H, W), jnp.float32)
    w_dw = jax.random.normal(k_dw, (Cin, 1, 3, 3), jnp.float32) * 0.2
    w_pw = jax.random.normal(k_pw, (Cout, Cin, 1, 1), jnp.float32) * 0.2
    gamma = jax.random.normal(k_g, (Cin,), jnp.float32) * 0.1 + 1.0
    beta = jax.random.normal(k_b, (Cin,), jnp.float32) * 0.1
    run_mean = jax.random.normal(k_m, (Cin,), jnp.float32) * 0.1
    run_var = jnp.abs(jax.random.normal(k_v, (Cin,), jnp.float32)) * 0.1 + 0.5

    out = dsconv_pallas(x, w_dw, gamma, beta, run_mean, run_var, w_pw,
                        atrous_rate=atrous_rate)
    out = jax.block_until_ready(out)

    ref = dsconv_reference(x, w_dw, gamma, beta, run_mean, run_var, w_pw,
                           atrous_rate=atrous_rate)
    ref = jax.block_until_ready(ref)

    assert out.shape == (N, Cout, H, W), out.shape
    max_err = float(jnp.max(jnp.abs(out - ref)))
    # bf16 MXU operands for the pointwise conv -> slightly looser tolerance.
    assert jnp.allclose(out, ref, atol=2e-2, rtol=2e-2), max_err

    print("KERNEL_OK")
</pallas_src>

<mosaic_0001>
module attributes {stable_mosaic.version = 11 : i64} {
  func.func @kernel(%arg0: i32, %arg1: i32, %arg2: memref<2x20x20x128xf32, #tpu.memory_space<any>>, %arg3: memref<3x3x128xf32, #tpu.memory_space<vmem>>, %arg4: memref<1x128xf32, #tpu.memory_space<vmem>>, %arg5: memref<128x128xbf16, #tpu.memory_space<vmem>>, %arg6: memref<1x128x128xf32, #tpu.memory_space<vmem>>, %arg7: memref<2x12x20x128xf32, #tpu.memory_space<vmem>>, %arg8: memref<2x!tpu.dma_semaphore, #tpu.memory_space<semaphore_mem>>) attributes {dimension_semantics = [#tpu.dimension_semantics<parallel>, #tpu.dimension_semantics<parallel>], iteration_bounds = array<i64: 2, 2>, scalar_prefetch = 0 : i64, scratch_operands = 2 : i64, tpu.core_type = #tpu.core_type<tc>, window_params = [{}, {pipeline_mode = #tpu.pipeline_mode<synchronous>, transform_indices = @transform_1, window_bounds = array<i64: 3, 3, 128>}, {pipeline_mode = #tpu.pipeline_mode<synchronous>, transform_indices = @transform_2, window_bounds = array<i64: 1, 128>}, {pipeline_mode = #tpu.pipeline_mode<synchronous>, transform_indices = @transform_3, window_bounds = array<i64: 128, 128>}, {transform_indices = @transform_4, window_bounds = array<i64: 1, 128, 128>}]} {
    %c8_i32 = arith.constant 8 : i32
    %0 = arith.muli %arg1, %c8_i32 : i32
    %c0 = arith.constant 0 : index
    %c0_0 = arith.constant 0 : index
    %c0_1 = arith.constant 0 : index
    %1 = vector.load %arg3[%c0, %c0_0, %c0_1] : memref<3x3x128xf32, #tpu.memory_space<vmem>>, vector<3x3x128xf32>
    %c0_2 = arith.constant 0 : index
    %c0_3 = arith.constant 0 : index
    %2 = vector.load %arg4[%c0_2, %c0_3] : memref<1x128xf32, #tpu.memory_space<vmem>>, vector<1x128xf32>
    %3 = vector.shape_cast %2 : vector<1x128xf32> to vector<128xf32>
    %c0_4 = arith.constant 0 : index
    %c0_5 = arith.constant 0 : index
    %4 = vector.load %arg5[%c0_4, %c0_5] : memref<128x128xbf16, #tpu.memory_space<vmem>>, vector<128x128xbf16>
    %c0_i32 = arith.constant 0 : i32
    %5 = arith.addi %0, %c0_i32 : i32
    %c0_i32_6 = arith.constant 0 : i32
    %c0_i32_7 = arith.constant 0 : i32
    %c0_i32_8 = arith.constant 0 : i32
    %c0_i32_9 = arith.constant 0 : i32
    %6 = tpu.memref_slice %arg2[%arg0, %5, %c0_i32_8, %c0_i32_9] : memref<2x20x20x128xf32, #tpu.memory_space<any>> -> memref<1x12x20x128xf32, #tpu.memory_space<any>>
    %7 = tpu.memref_squeeze %6 : memref<1x12x20x128xf32, #tpu.memory_space<any>> -> memref<12x20x128xf32, #tpu.memory_space<any>>
    %c0_i32_10 = arith.constant 0 : i32
    %c0_i32_11 = arith.constant 0 : i32
    %c0_i32_12 = arith.constant 0 : i32
    %8 = tpu.memref_slice %arg7[%c0_i32_6, %c0_i32_10, %c0_i32_11, %c0_i32_12] : memref<2x12x20x128xf32, #tpu.memory_space<vmem>> -> memref<1x12x20x128xf32, #tpu.memory_space<vmem>>
    %9 = tpu.memref_squeeze %8 : memref<1x12x20x128xf32, #tpu.memory_space<vmem>> -> memref<12x20x128xf32, #tpu.memory_space<vmem>>
    %10 = tpu.memref_slice %arg8[%c0_i32_7] : memref<2x!tpu.dma_semaphore, #tpu.memory_space<semaphore_mem>> -> memref<1x!tpu.dma_semaphore, #tpu.memory_space<semaphore_mem>>
    %11 = tpu.memref_squeeze %10 : memref<1x!tpu.dma_semaphore, #tpu.memory_space<semaphore_mem>> -> memref<!tpu.dma_semaphore, #tpu.memory_space<semaphore_mem>>
    tpu.enqueue_dma source(%7 : memref<12x20x128xf32, #tpu.memory_space<any>>) target(%9 : memref<12x20x128xf32, #tpu.memory_space<vmem>>) target_semaphore(%11 : memref<!tpu.dma_semaphore, #tpu.memory_space<semaphore_mem>>)
    %c0_i32_13 = arith.constant 0 : i32
    %c0_i32_14 = arith.constant 0 : i32
    %c0_i32_15 = arith.constant 0 : i32
    %c0_i32_16 = arith.constant 0 : i32
    %c0_i32_17 = arith.constant 0 : i32
    %c0_i32_18 = arith.constant 0 : i32
    %12 = tpu.memref_slice %arg2[%c0_i32_13, %c0_i32_16, %c0_i32_17, %c0_i32_18] : memref<2x20x20x128xf32, #tpu.memory_space<any>> -> memref<1x12x20x128xf32, #tpu.memory_space<any>>
    %13 = tpu.memref_squeeze %12 : memref<1x12x20x128xf32, #tpu.memory_space<any>> -> memref<12x20x128xf32, #tpu.memory_space<any>>
    %c0_i32_19 = arith.constant 0 : i32
    %c0_i32_20 = arith.constant 0 : i32
    %c0_i32_21 = arith.constant 0 : i32
    %14 = tpu.memref_slice %arg7[%c0_i32_14, %c0_i32_19, %c0_i32_20, %c0_i32_21] : memref<2x12x20x128xf32, #tpu.memory_space<vmem>> -> memref<1x12x20x128xf32, #tpu.memory_space<vmem>>
    %15 = tpu.memref_squeeze %14 : memref<1x12x20x128xf32, #tpu.memory_space<vmem>> -> memref<12x20x128xf32, #tpu.memory_space<vmem>>
    %16 = tpu.memref_slice %arg8[%c0_i32_15] : memref<2x!tpu.dma_semaphore, #tpu.memory_space<semaphore_mem>> -> memref<1x!tpu.dma_semaphore, #tpu.memory_space<semaphore_mem>>
    %17 = tpu.memref_squeeze %16 : memref<1x!tpu.dma_semaphore, #tpu.memory_space<semaphore_mem>> -> memref<!tpu.dma_semaphore, #tpu.memory_space<semaphore_mem>>
    tpu.wait_dma2 semaphore(%17 : memref<!tpu.dma_semaphore, #tpu.memory_space<semaphore_mem>>) src(%13 : memref<12x20x128xf32, #tpu.memory_space<any>>) dst(%15 : memref<12x20x128xf32, #tpu.memory_space<vmem>>)
    %cst = arith.constant 0.000000e+00 : f32
    %18 = vector.broadcast %cst : f32 to vector<8x16x128xf32>
    %c0_22 = arith.constant 0 : index
    %c0_23 = arith.constant 0 : index
    %c0_24 = arith.constant 0 : index
    %c0_25 = arith.constant 0 : index
    %19 = vector.load %arg7[%c0_22, %c0_23, %c0_24, %c0_25] : memref<2x12x20x128xf32, #tpu.memory_space<vmem>>, vector<1x8x16x128xf32>
    %20 = vector.shape_cast %19 : vector<1x8x16x128xf32> to vector<8x16x128xf32>
    %21 = vector.extract_strided_slice %1 {offsets = [0, 0, 0], sizes = [1, 1, 128], strides = [1, 1, 1]} : vector<3x3x128xf32> to vector<1x1x128xf32>
    %22 = vector.shape_cast %21 : vector<1x1x128xf32> to vector<128xf32>
    %23 = vector.shape_cast %22 : vector<128xf32> to vector<1x1x128xf32>
    %24 = vector.broadcast %23 : vector<1x1x128xf32> to vector<8x16x128xf32>
    %25 = arith.mulf %20, %24 : vector<8x16x128xf32>
    %26 = arith.addf %18, %25 : vector<8x16x128xf32>
    %c0_26 = arith.constant 0 : index
    %c0_27 = arith.constant 0 : index
    %c2 = arith.constant 2 : index
    %c0_28 = arith.constant 0 : index
    %27 = vector.load %arg7[%c0_26, %c0_27, %c2, %c0_28] : memref<2x12x20x128xf32, #tpu.memory_space<vmem>>, vector<1x8x16x128xf32>
    %28 = vector.shape_cast %27 : vector<1x8x16x128xf32> to vector<8x16x128xf32>
    %29 = vector.extract_strided_slice %1 {offsets = [0, 1, 0], sizes = [1, 1, 128], strides = [1, 1, 1]} : vector<3x3x128xf32> to vector<1x1x128xf32>
    %30 = vector.shape_cast %29 : vector<1x1x128xf32> to vector<128xf32>
    %31 = vector.shape_cast %30 : vector<128xf32> to vector<1x1x128xf32>
    %32 = vector.broadcast %31 : vector<1x1x128xf32> to vector<8x16x128xf32>
    %33 = arith.mulf %28, %32 : vector<8x16x128xf32>
    %34 = arith.addf %26, %33 : vector<8x16x128xf32>
    %c0_29 = arith.constant 0 : index
    %c0_30 = arith.constant 0 : index
    %c4 = arith.constant 4 : index
    %c0_31 = arith.constant 0 : index
    %35 = vector.load %arg7[%c0_29, %c0_30, %c4, %c0_31] : memref<2x12x20x128xf32, #tpu.memory_space<vmem>>, vector<1x8x16x128xf32>
    %36 = vector.shape_cast %35 : vector<1x8x16x128xf32> to vector<8x16x128xf32>
    %37 = vector.extract_strided_slice %1 {offsets = [0, 2, 0], sizes = [1, 1, 128], strides = [1, 1, 1]} : vector<3x3x128xf32> to vector<1x1x128xf32>
    %38 = vector.shape_cast %37 : vector<1x1x128xf32> to vector<128xf32>
    %39 = vector.shape_cast %38 : vector<128xf32> to vector<1x1x128xf32>
    %40 = vector.broadcast %39 : vector<1x1x128xf32> to vector<8x16x128xf32>
    %41 = arith.mulf %36, %40 : vector<8x16x128xf32>
    %42 = arith.addf %34, %41 : vector<8x16x128xf32>
    %c0_32 = arith.constant 0 : index
    %c2_33 = arith.constant 2 : index
    %c0_34 = arith.constant 0 : index
    %c0_35 = arith.constant 0 : index
    %43 = vector.load %arg7[%c0_32, %c2_33, %c0_34, %c0_35] : memref<2x12x20x128xf32, #tpu.memory_space<vmem>>, vector<1x8x16x128xf32>
    %44 = vector.shape_cast %43 : vector<1x8x16x128xf32> to vector<8x16x128xf32>
    %45 = vector.extract_strided_slice %1 {offsets = [1, 0, 0], sizes = [1, 1, 128], strides = [1, 1, 1]} : vector<3x3x128xf32> to vector<1x1x128xf32>
    %46 = vector.shape_cast %45 : vector<1x1x128xf32> to vector<128xf32>
    %47 = vector.shape_cast %46 : vector<128xf32> to vector<1x1x128xf32>
    %48 = vector.broadcast %47 : vector<1x1x128xf32> to vector<8x16x128xf32>
    %49 = arith.mulf %44, %48 : vector<8x16x128xf32>
    %50 = arith.addf %42, %49 : vector<8x16x128xf32>
    %c0_36 = arith.constant 0 : index
    %c2_37 = arith.constant 2 : index
    %c2_38 = arith.constant 2 : index
    %c0_39 = arith.constant 0 : index
    %51 = vector.load %arg7[%c0_36, %c2_37, %c2_38, %c0_39] : memref<2x12x20x128xf32, #tpu.memory_space<vmem>>, vector<1x8x16x128xf32>
    %52 = vector.shape_cast %51 : vector<1x8x16x128xf32> to vector<8x16x128xf32>
    %53 = vector.extract_strided_slice %1 {offsets = [1, 1, 0], sizes = [1, 1, 128], strides = [1, 1, 1]} : vector<3x3x128xf32> to vector<1x1x128xf32>
    %54 = vector.shape_cast %53 : vector<1x1x128xf32> to vector<128xf32>
    %55 = vector.shape_cast %54 : vector<128xf32> to vector<1x1x128xf32>
    %56 = vector.broadcast %55 : vector<1x1x128xf32> to vector<8x16x128xf32>
    %57 = arith.mulf %52, %56 : vector<8x16x128xf32>
    %58 = arith.addf %50, %57 : vector<8x16x128xf32>
    %c0_40 = arith.constant 0 : index
    %c2_41 = arith.constant 2 : index
    %c4_42 = arith.constant 4 : index
    %c0_43 = arith.constant 0 : index
    %59 = vector.load %arg7[%c0_40, %c2_41, %c4_42, %c0_43] : memref<2x12x20x128xf32, #tpu.memory_space<vmem>>, vector<1x8x16x128xf32>
    %60 = vector.shape_cast %59 : vector<1x8x16x128xf32> to vector<8x16x128xf32>
    %61 = vector.extract_strided_slice %1 {offsets = [1, 2, 0], sizes = [1, 1, 128], strides = [1, 1, 1]} : vector<3x3x128xf32> to vector<1x1x128xf32>
    %62 = vector.shape_cast %61 : vector<1x1x128xf32> to vector<128xf32>
    %63 = vector.shape_cast %62 : vector<128xf32> to vector<1x1x128xf32>
    %64 = vector.broadcast %63 : vector<1x1x128xf32> to vector<8x16x128xf32>
    %65 = arith.mulf %60, %64 : vector<8x16x128xf32>
    %66 = arith.addf %58, %65 : vector<8x16x128xf32>
    %c0_44 = arith.constant 0 : index
    %c4_45 = arith.constant 4 : index
    %c0_46 = arith.constant 0 : index
    %c0_47 = arith.constant 0 : index
    %67 = vector.load %arg7[%c0_44, %c4_45, %c0_46, %c0_47] : memref<2x12x20x128xf32, #tpu.memory_space<vmem>>, vector<1x8x16x128xf32>
    %68 = vector.shape_cast %67 : vector<1x8x16x128xf32> to vector<8x16x128xf32>
    %69 = vector.extract_strided_slice %1 {offsets = [2, 0, 0], sizes = [1, 1, 128], strides = [1, 1, 1]} : vector<3x3x128xf32> to vector<1x1x128xf32>
    %70 = vector.shape_cast %69 : vector<1x1x128xf32> to vector<128xf32>
    %71 = vector.shape_cast %70 : vector<128xf32> to vector<1x1x128xf32>
    %72 = vector.broadcast %71 : vector<1x1x128xf32> to vector<8x16x128xf32>
    %73 = arith.mulf %68, %72 : vector<8x16x128xf32>
    %74 = arith.addf %66, %73 : vector<8x16x128xf32>
    %c0_48 = arith.constant 0 : index
    %c4_49 = arith.constant 4 : index
    %c2_50 = arith.constant 2 : index
    %c0_51 = arith.constant 0 : index
    %75 = vector.load %arg7[%c0_48, %c4_49, %c2_50, %c0_51] : memref<2x12x20x128xf32, #tpu.memory_space<vmem>>, vector<1x8x16x128xf32>
    %76 = vector.shape_cast %75 : vector<1x8x16x128xf32> to vector<8x16x128xf32>
    %77 = vector.extract_strided_slice %1 {offsets = [2, 1, 0], sizes = [1, 1, 128], strides = [1, 1, 1]} : vector<3x3x128xf32> to vector<1x1x128xf32>
    %78 = vector.shape_cast %77 : vector<1x1x128xf32> to vector<128xf32>
    %79 = vector.shape_cast %78 : vector<128xf32> to vector<1x1x128xf32>
    %80 = vector.broadcast %79 : vector<1x1x128xf32> to vector<8x16x128xf32>
    %81 = arith.mulf %76, %80 : vector<8x16x128xf32>
    %82 = arith.addf %74, %81 : vector<8x16x128xf32>
    %c0_52 = arith.constant 0 : index
    %c4_53 = arith.constant 4 : index
    %c4_54 = arith.constant 4 : index
    %c0_55 = arith.constant 0 : index
    %83 = vector.load %arg7[%c0_52, %c4_53, %c4_54, %c0_55] : memref<2x12x20x128xf32, #tpu.memory_space<vmem>>, vector<1x8x16x128xf32>
    %84 = vector.shape_cast %83 : vector<1x8x16x128xf32> to vector<8x16x128xf32>
    %85 = vector.extract_strided_slice %1 {offsets = [2, 2, 0], sizes = [1, 1, 128], strides = [1, 1, 1]} : vector<3x3x128xf32> to vector<1x1x128xf32>
    %86 = vector.shape_cast %85 : vector<1x1x128xf32> to vector<128xf32>
    %87 = vector.shape_cast %86 : vector<128xf32> to vector<1x1x128xf32>
    %88 = vector.broadcast %87 : vector<1x1x128xf32> to vector<8x16x128xf32>
    %89 = arith.mulf %84, %88 : vector<8x16x128xf32>
    %90 = arith.addf %82, %89 : vector<8x16x128xf32>
    %91 = vector.shape_cast %3 : vector<128xf32> to vector<1x1x128xf32>
    %92 = vector.broadcast %91 : vector<1x1x128xf32> to vector<8x16x128xf32>
    %93 = arith.addf %90, %92 : vector<8x16x128xf32>
    %cst_56 = arith.constant 0.000000e+00 : f32
    %94 = vector.broadcast %cst_56 : f32 to vector<8x16x128xf32>
    %95 = arith.maximumf %93, %94 : vector<8x16x128xf32>
    %96 = arith.truncf %95 : vector<8x16x128xf32> to vector<8x16x128xbf16>
    %97 = vector.shape_cast %96 : vector<8x16x128xbf16> to vector<128x128xbf16>
    %cst_57 = arith.constant dense<0.000000e+00> : vector<128x128xf32>
    %98 = tpu.matmul %97, %4, %cst_57 {dimension_numbers = #tpu.dot_dimension_numbers<[1], [0], [0], [1], [0, 0, 1, 1], [], []>} : vector<128x128xbf16>, vector<128x128xbf16>, vector<128x128xf32> -> vector<128x128xf32>
    %c0_58 = arith.constant 0 : index
    %c0_59 = arith.constant 0 : index
    %c0_60 = arith.constant 0 : index
    %99 = vector.load %arg6[%c0_58, %c0_59, %c0_60] : memref<1x128x128xf32, #tpu.memory_space<vmem>>, vector<1x128x128xf32>
    %100 = vector.shape_cast %99 : vector<1x128x128xf32> to vector<128x128xf32>
    %101 = vector.shape_cast %98 : vector<128x128xf32> to vector<1x128x128xf32>
    tpu.vector_store %arg6[%c0_58, %c0_59, %c0_60], %101 {strides = array<i32>} : memref<1x128x128xf32, #tpu.memory_space<vmem>>, vector<1x128x128xf32>,
    return
  }
  func.func @transform_1(%arg0: i32, %arg1: i32) -> (i32, i32, i32) {
    %c0_i32 = arith.constant 0 : i32
    %c0_i32_0 = arith.constant 0 : i32
    %c0_i32_1 = arith.constant 0 : i32
    %c0_i32_2 = arith.constant 0 : i32
    return %c0_i32, %c0_i32_0, %c0_i32_1 : i32, i32, i32
  }
  func.func @transform_2(%arg0: i32, %arg1: i32) -> (i32, i32) {
    %c0_i32 = arith.constant 0 : i32
    %c0_i32_0 = arith.constant 0 : i32
    %c0_i32_1 = arith.constant 0 : i32
    return %c0_i32, %c0_i32_0 : i32, i32
  }
  func.func @transform_3(%arg0: i32, %arg1: i32) -> (i32, i32) {
    %c0_i32 = arith.constant 0 : i32
    %c0_i32_0 = arith.constant 0 : i32
    %c0_i32_1 = arith.constant 0 : i32
    return %c0_i32, %c0_i32_0 : i32, i32
  }
  func.func @transform_4(%arg0: i32, %arg1: i32) -> (i32, i32, i32) {
    %c0_i32 = arith.constant 0 : i32
    %c0_i32_0 = arith.constant 0 : i32
    return %arg0, %arg1, %c0_i32 : i32, i32, i32
  }
}

</mosaic_0001>

<llo_original>
// kernel: tpu_custom_call.1
$region0: #{tpu_custom_call.1}
  #allocation0 [shape = 'u32[]', space=smem, size = 0x4, offset = 0x4, fixed_abs, tag = 'smem constant byte address 0x4 - core index']
  #allocation1 [shape = 'u32[144,128]{1,0:T(1,128)}', space=vmem, size = 0x12000, scoped, tag = 'internal scratch']
  #allocation2 [shape = 'f32[2,12,20,128]{3,2,1,0:T(8,128)}', space=vmem, size = 0x48000, scoped, tag = 'scratch operand']
  #allocation3 [shape = 's32[2]{0}', space=sflag, size = 0x8, scoped, tag = 'scratch operand']
  #allocation6 [shape = 's32[]', space=sflag, size = 0x4, offset = 0, fixed_abs, tag = 'sflag constant byte address 0x0 - dummy sync flag']
  %s0 = inlined_call_operand.vmem [shape: f32[2,20,20,128], index: 0, kind: input, shape index: {}]
  %s1 = inlined_call_operand.vmem [shape: f32[3,3,128], index: 1, kind: input, shape index: {}]
  %s2 = inlined_call_operand.vmem [shape: f32[1,128], index: 2, kind: input, shape index: {}]
  %s3 = inlined_call_operand.vmem [shape: bf16[128,128], index: 3, kind: input, shape index: {}]
  %s4 = inlined_call_operand.hbm [shape: f32[2,256,128], index: 4, kind: output, shape index: {}]
  %s5 = sld [smem:[#allocation0]]
  $region82: #{tpu_custom_call.1} parent=0
    _
  %s7 = ssub.s32 1, %s5
  %s8 = scalar_select 0, %s7, %s5
  $region1: #{tpu_custom_call.1} parent=0
    #allocation4 [shape = 'u8[131072]{0}', space=vmem, size = 0x20000, scoped, tag = 'output window, operand 0']
    #allocation5 [shape = 's32[2]{0}', space=sflag, size = 0x8, scoped, tag = 'scoped memory for tpu_custom_call.1']
    %9 = vsyncpa [#allocation5], 0
    %s10 = scalar_lea.sflag [#allocation5], 1
    %11 = vsyncpa %s10, 0
    loop: start=0, step=1, limit=6
    $region2: #{tpu_custom_call.1} parent=1 // loop_pre_header
      _
    $region3: #{tpu_custom_call.1} parent=1 // loop_header
      %s13 = sphi 0, %s17
      %p14 = scmp.ge.s32.totalorder %s13, 6
      %s20 = sphi 0, %s32
      %s21 = sphi 0, %s28
      %s22 = sphi 0, %s20
      %s23 = sphi 0, %s21
      %s24 = sphi 0, %s22
      %s25 = sphi 0, %s23
      %s33 = sphi 0, %s33
      %s35 = sphi 0, %s33
      %s36 = sphi 0, %s35
      %s50 = sphi 0, %s36
      %s54 = sphi 0, %s54
      %s56 = sphi 0, %s54
      %s57 = sphi 0, %s56
      %s71 = sphi 0, %s57
      %s75 = sphi 0, %s75
      %s77 = sphi 0, %s75
      %s78 = sphi 0, %s77
      %s92 = sphi 0, %s78
      %s100 = sphi 0, %s102
      %s103 = sphi 0, %s100
      %s104 = sphi 0, %s103
      %s120 = sphi 0, %s104
    $region4: #{tpu_custom_call.1} parent=1 // loop_header_branch
      %16 = sbr.rel (%p14) target = $region8
    $region5: #{tpu_custom_call.1} parent=1 // loop_body
      %s18 = ssub.s32 %s13, 1
      %s19 = ssub.s32 %s13, 2
      %s26 = sadd.s32 1, %s21
      %p27 = scmp.ge.s32.totalorder %s26, 2
      %s28 = scalar_select %p27, 0, %s26
      %s29 = sadd.s32 1, %s20
      %s30 = scalar_select %p27, %s29, %s20
      %p31 = scmp.ge.s32.totalorder %s30, 2
      %s32 = scalar_select %p31, 0, %s30
      %s34 = sadd.s32 %s33, 1
      %p37 = scmp.eq.s32.totalorder %s13, 3
      %p38 = scmp.ne.s32.totalorder %s33, %s35
      %p39 = scmp.eq.s32.totalorder %s13, 0
      %p40 = por %p38, %p39
      %p41 = scmp.ne.s32.totalorder %s33, %s35
      %p42 = scmp.eq.s32.totalorder %s18, 3
      %p43 = por %p41, %p42
      %p44 = scmp.ne.s32.totalorder %s35, %s36
      %p45 = scmp.eq.s32.totalorder %s18, 0
      %p46 = por %p44, %p45
      %p47 = scmp.ne.s32.totalorder %s35, %s36
      %p48 = scmp.eq.s32.totalorder %s19, 3
      %p49 = por %p47, %p48
      %p51 = scmp.ne.s32.totalorder %s36, %s50
      %p52 = scmp.eq.s32.totalorder %s19, 0
      %p53 = por %p51, %p52
      %s55 = sadd.s32 %s54, 1
      %p58 = scmp.eq.s32.totalorder %s13, 3
      %p59 = scmp.ne.s32.totalorder %s54, %s56
      %p60 = scmp.eq.s32.totalorder %s13, 0
      %p61 = por %p59, %p60
      %p62 = scmp.ne.s32.totalorder %s54, %s56
      %p63 = scmp.eq.s32.totalorder %s18, 3
      %p64 = por %p62, %p63
      %p65 = scmp.ne.s32.totalorder %s56, %s57
      %p66 = scmp.eq.s32.totalorder %s18, 0
      %p67 = por %p65, %p66
      %p68 = scmp.ne.s32.totalorder %s56, %s57
      %p69 = scmp.eq.s32.totalorder %s19, 3
      %p70 = por %p68, %p69
      %p72 = scmp.ne.s32.totalorder %s57, %s71
      %p73 = scmp.eq.s32.totalorder %s19, 0
      %p74 = por %p72, %p73
      %s76 = sadd.s32 %s75, 1
      %p79 = scmp.eq.s32.totalorder %s13, 3
      %p80 = scmp.ne.s32.totalorder %s75, %s77
      %p81 = scmp.eq.s32.totalorder %s13, 0
      %p82 = por %p80, %p81
      %p83 = scmp.ne.s32.totalorder %s75, %s77
      %p84 = scmp.eq.s32.totalorder %s18, 3
      %p85 = por %p83, %p84
      %p86 = scmp.ne.s32.totalorder %s77, %s78
      %p87 = scmp.eq.s32.totalorder %s18, 0
      %p88 = por %p86, %p87
      %p89 = scmp.ne.s32.totalorder %s77, %s78
      %p90 = scmp.eq.s32.totalorder %s19, 3
      %p91 = por %p89, %p90
      %p93 = scmp.ne.s32.totalorder %s78, %s92
      %p94 = scmp.eq.s32.totalorder %s19, 0
      %p95 = por %p93, %p94
      %s96 = ssub.s32 %s20, %s32
      %s97 = ssub.s32 %s21, %s28
      %s98 = sor.u32 %s96, %s97
      %p99 = scmp.eq.s32.totalorder %s98, 0
      %s101 = sadd.s32 %s100, 1
      %s102 = scalar_select %p99, %s100, %s101
      %p105 = pneg %p99
      %p106 = scmp.eq.s32.totalorder %s13, 3
      %p107 = por %p105, %p106
      %p108 = scmp.ne.s32.totalorder %s100, %s103
      %p109 = scmp.eq.s32.totalorder %s13, 0
      %p110 = por %p108, %p109
      %p111 = scmp.ne.s32.totalorder %s100, %s103
      %p112 = scmp.eq.s32.totalorder %s18, 3
      %p113 = por %p111, %p112
      %p114 = scmp.ne.s32.totalorder %s103, %s104
      %p115 = scmp.eq.s32.totalorder %s18, 0
      %p116 = por %p114, %p115
      %p117 = scmp.ne.s32.totalorder %s103, %s104
      %p118 = scmp.eq.s32.totalorder %s19, 3
      %p119 = por %p117, %p118
      %p121 = scmp.ne.s32.totalorder %s104, %s120
      %p122 = scmp.eq.s32.totalorder %s19, 0
      %p123 = por %p121, %p122
      %p124 = scmp.le.s32.totalorder 1, %s13
      %p125 = scmp.lt.s32.totalorder %s13, 5
      %p126 = pnand %p124, %p125
      %p127 = pneg %p126
      // Predicated region
      $region9: #{tpu_custom_call.1} parent=5 // pred_check
        _
      $region10: #{tpu_custom_call.1} parent=5 // pred_check_branch
        %129 = sbr.rel (%p126) target = $region12
      $region11: #{tpu_custom_call.1} parent=5 // pred_region
        %s130 = ssub.s32 %s13, 1
        // Predicated region
        $region13: #{tpu_custom_call.1} parent=11 // pred_check
          %p131 = pneg %p46
        $region14: #{tpu_custom_call.1} parent=11 // pred_check_branch
          %133 = sbr.rel (%p131) target = $region16
        $region15: #{tpu_custom_call.1} parent=11 // pred_region
          _
        $region16: #{tpu_custom_call.1} parent=11 // pred_fallthru
          _
        // Predicated region
        $region17: #{tpu_custom_call.1} parent=11 // pred_check
          %p134 = pneg %p67
        $region18: #{tpu_custom_call.1} parent=11 // pred_check_branch
          %136 = sbr.rel (%p134) target = $region20
        $region19: #{tpu_custom_call.1} parent=11 // pred_region
          _
        $region20: #{tpu_custom_call.1} parent=11 // pred_fallthru
          _
        // Predicated region
        $region21: #{tpu_custom_call.1} parent=11 // pred_check
          %p137 = pneg %p88
        $region22: #{tpu_custom_call.1} parent=11 // pred_check_branch
          %139 = sbr.rel (%p137) target = $region24
        $region23: #{tpu_custom_call.1} parent=11 // pred_region
          _
        $region24: #{tpu_custom_call.1} parent=11 // pred_fallthru
          _
      $region12: #{tpu_custom_call.1} parent=5 // pred_fallthru
        _
      %p140 = scmp.lt.s32.totalorder %s13, 4
      // Predicated region
      $region25: #{tpu_custom_call.1} parent=5 // pred_check
        %p141 = pneg %p140
      $region26: #{tpu_custom_call.1} parent=5 // pred_check_branch
        %143 = sbr.rel (%p141) target = $region28
      $region27: #{tpu_custom_call.1} parent=5 // pred_region
        _
      $region28: #{tpu_custom_call.1} parent=5 // pred_fallthru
        _
      %p144 = scmp.le.s32.totalorder 1, %s13
      %p145 = scmp.lt.s32.totalorder %s13, 5
      %p146 = pnand %p144, %p145
      %p147 = pneg %p146
      // Predicated region
      $region29: #{tpu_custom_call.1} parent=5 // pred_check
        _
      $region30: #{tpu_custom_call.1} parent=5 // pred_check_branch
        %149 = sbr.rel (%p146) target = $region32
      $region31: #{tpu_custom_call.1} parent=5 // pred_region
        %s150 = ssub.s32 %s13, 1
        %p151 = pneg %p46
        %p152 = pneg %p43
        %p153 = pneg %p67
        %p154 = pneg %p64
        %p155 = pneg %p88
        %p156 = pneg %p85
        %p157 = pneg %p116
        %p158 = pneg %p113
        %s159 = sand.u32 %s103, 1
        %s160 = scalar_lea.sflag [#allocation5], %s159
        %s161 = sand.u32 %s103, 1
        %s162 = smul.addr %s161, 128
        %s163 = scalar_lea.vmem [#allocation4], %s162
        %s164 = smul.u32 16, %s23
        %s166 = smul.u32 %s23, 8
        %v167 = vld [vmem:[%s1] sm:$0x7]
        %v168 = vld [vmem:[%s1 + $0x4] sm:$0x7]
        %v169 = vld [vmem:[%s1 + $0x8] sm:$0x7]
        %v170 = vld [vmem:[%s2] sm:$0x1]
        %v171 = vld [vmem:[%s3] sm:$0xf]
        %v172 = vld [vmem:[%s3 + $0x4] sm:$0xf]
        %v173 = vld [vmem:[%s3 + $0x8] sm:$0xf]
        %v174 = vld [vmem:[%s3 + $0xc] sm:$0xf]
        %v175 = vld [vmem:[%s3 + $0x10] sm:$0xf]
        %v176 = vld [vmem:[%s3 + $0x14] sm:$0xf]
        %v177 = vld [vmem:[%s3 + $0x18] sm:$0xf]
        %v178 = vld [vmem:[%s3 + $0x1c] sm:$0xf]
        %v179 = vld [vmem:[%s3 + $0x20] sm:$0xf]
        %v180 = vld [vmem:[%s3 + $0x24] sm:$0xf]
        %v181 = vld [vmem:[%s3 + $0x28] sm:$0xf]
        %v182 = vld [vmem:[%s3 + $0x2c] sm:$0xf]
        %v183 = vld [vmem:[%s3 + $0x30] sm:$0xf]
        %v184 = vld [vmem:[%s3 + $0x34] sm:$0xf]
        %v185 = vld [vmem:[%s3 + $0x38] sm:$0xf]
        %v186 = vld [vmem:[%s3 + $0x3c] sm:$0xf]
        %s187 = smul.u32 %s166, 24
        %s188 = smul.u32 %s22, 480
        %s189 = sadd.s32 %s187, %s188
        %s190 = scalar_lea.vmem %s0, %s189
        %p192 = scmp.lt.u32.totalorder 20, 8
        %p193 = pneg %p192
        // Predicated region
        $region33: #{tpu_custom_call.1} parent=31 // pred_check
          _
        $region34: #{tpu_custom_call.1} parent=31 // pred_check_branch
          %195 = sbr.rel (%p192) target = $region36
        $region35: #{tpu_custom_call.1} parent=31 // pred_region
          %s233 = sand.u32 20, 7
          %p234 = scmp.eq.s32.totalorder %s233, 0
          %p235 = pneg %p234
          // Predicated region
          $region48: #{tpu_custom_call.1} parent=35 // pred_check
            _
          $region49: #{tpu_custom_call.1} parent=35 // pred_check_branch
            %237 = sbr.rel (%p234) target = $region51
          $region50: #{tpu_custom_call.1} parent=35 // pred_region
            %s238 = sand.u32 20, 7
            %s239 = ssub.s32 20, %s238
            %s240 = scalar_lea.vmem %s190, %s239
            %s241 = ssub.s32 20, %s238
            %s242 = scalar_lea.vmem [#allocation2], %s241
            loop: start=0, step=1, limit=1
            $region52: #{tpu_custom_call.1} parent=50 // loop_pre_header
              _
            $region53: #{tpu_custom_call.1} parent=50 // loop_header
              %s244 = sphi 0, %s248
              %p245 = scmp.ge.s32.totalorder %s244, 1
              %s249 = sphi %s190, %s190
              %s250 = sphi [#allocation2], [#allocation2]
            $region54: #{tpu_custom_call.1} parent=50 // loop_header_branch
              %247 = sbr.rel (%p245) target = $region58
            $region55: #{tpu_custom_call.1} parent=50 // loop_body
              %v251 = vld [vmem:[%s249] sm:$0xff]
              %252 = vst [vmem:[%s250] sm:$0xff] %v251
              %v253 = vld [vmem:[%s249 + $0x8] sm:$0xff]
              %254 = vst [vmem:[%s250 + $0x8] sm:$0xff] %v253
              %v255 = vld [vmem:[%s249 + $0x18] sm:$0xff]
              %256 = vst [vmem:[%s250 + $0x18] sm:$0xff] %v255
              %v257 = vld [vmem:[%s249 + $0x20] sm:$0xff]
              %258 = vst [vmem:[%s250 + $0x20] sm:$0xff] %v257
              %v259 = vld [vmem:[%s249 + $0x30] sm:$0xff]
              %260 = vst [vmem:[%s250 + $0x30] sm:$0xff] %v259
              %v261 = vld [vmem:[%s249 + $0x38] sm:$0xff]
              %262 = vst [vmem:[%s250 + $0x38] sm:$0xff] %v261
              %v263 = vld [vmem:[%s249 + $0x48] sm:$0xff]
              %264 = vst [vmem:[%s250 + $0x48] sm:$0xff] %v263
              %v265 = vld [vmem:[%s249 + $0x50] sm:$0xff]
              %266 = vst [vmem:[%s250 + $0x50] sm:$0xff] %v265
              %v267 = vld [vmem:[%s249 + $0x60] sm:$0xff]
              %268 = vst [vmem:[%s250 + $0x60] sm:$0xff] %v267
              %v269 = vld [vmem:[%s249 + $0x68] sm:$0xff]
              %270 = vst [vmem:[%s250 + $0x68] sm:$0xff] %v269
              %v271 = vld [vmem:[%s249 + $0x78] sm:$0xff]
              %272 = vst [vmem:[%s250 + $0x78] sm:$0xff] %v271
              %v273 = vld [vmem:[%s249 + $0x80] sm:$0xff]
              %274 = vst [vmem:[%s250 + $0x80] sm:$0xff] %v273
              %v275 = vld [vmem:[%s249 + $0x90] sm:$0xff]
              %276 = vst [vmem:[%s250 + $0x90] sm:$0xff] %v275
              %v277 = vld [vmem:[%s249 + $0x98] sm:$0xff]
              %278 = vst [vmem:[%s250 + $0x98] sm:$0xff] %v277
              %v279 = vld [vmem:[%s249 + $0xa8] sm:$0xff]
              %280 = vst [vmem:[%s250 + $0xa8] sm:$0xff] %v279
              %v281 = vld [vmem:[%s249 + $0xb0] sm:$0xff]
              %282 = vst [vmem:[%s250 + $0xb0] sm:$0xff] %v281
              %v283 = vld [vmem:[%s249 + $0xc0] sm:$0xff]
              %284 = vst [vmem:[%s250 + $0xc0] sm:$0xff] %v283
              %v285 = vld [vmem:[%s249 + $0xc8] sm:$0xff]
              %286 = vst [vmem:[%s250 + $0xc8] sm:$0xff] %v285
              %v287 = vld [vmem:[%s249 + $0xd8] sm:$0xff]
              %288 = vst [vmem:[%s250 + $0xd8] sm:$0xff] %v287
              %v289 = vld [vmem:[%s249 + $0xe0] sm:$0xff]
              %290 = vst [vmem:[%s250 + $0xe0] sm:$0xff] %v289
              %v291 = vld [vmem:[%s249 + $0xf0] sm:$0xff]
              %292 = vst [vmem:[%s250 + $0xf0] sm:$0xff] %v291
              %v293 = vld [vmem:[%s249 + $0xf8] sm:$0xff]
              %294 = vst [vmem:[%s250 + $0xf8] sm:$0xff] %v293
              %v295 = vld [vmem:[%s249 + $0x108] sm:$0xff]
              %296 = vst [vmem:[%s250 + $0x108] sm:$0xff] %v295
              %v297 = vld [vmem:[%s249 + $0x110] sm:$0xff]
              %298 = vst [vmem:[%s250 + $0x110] sm:$0xff] %v297
            $region56: #{tpu_custom_call.1} parent=50 // loop_footer
              %s248 = sadd.s32 1, %s244
            $region57: #{tpu_custom_call.1} parent=50 // loop_footer_branch
              %243 = sbr.rel target = $region53
            $region58: #{tpu_custom_call.1} parent=50 // loop_exit
              _
            %s299 = sshll.u32 1, %s238
            %s300 = ssub.s32 %s299, 1
            loop: start=0, step=1, limit=1
            $region59: #{tpu_custom_call.1} parent=50 // loop_pre_header
              _
            $region60: #{tpu_custom_call.1} parent=50 // loop_header
              %s302 = sphi 0, %s306
              %p303 = scmp.ge.s32.totalorder %s302, 1
              %s307 = sphi %s240, %s240
              %s308 = sphi %s242, %s242
            $region61: #{tpu_custom_call.1} parent=50 // loop_header_branch
              %305 = sbr.rel (%p303) target = $region65
            $region62: #{tpu_custom_call.1} parent=50 // loop_body
              %v309 = vld [vmem:[%s307] sm:%s300]
              %310 = vst [vmem:[%s308] sm:%s300] %v309
              %v311 = vld [vmem:[%s307 + $0x18] sm:%s300]
              %312 = vst [vmem:[%s308 + $0x18] sm:%s300] %v311
              %v313 = vld [vmem:[%s307 + $0x30] sm:%s300]
              %314 = vst [vmem:[%s308 + $0x30] sm:%s300] %v313
              %v315 = vld [vmem:[%s307 + $0x48] sm:%s300]
              %316 = vst [vmem:[%s308 + $0x48] sm:%s300] %v315
              %v317 = vld [vmem:[%s307 + $0x60] sm:%s300]
              %318 = vst [vmem:[%s308 + $0x60] sm:%s300] %v317
              %v319 = vld [vmem:[%s307 + $0x78] sm:%s300]
              %320 = vst [vmem:[%s308 + $0x78] sm:%s300] %v319
              %v321 = vld [vmem:[%s307 + $0x90] sm:%s300]
              %322 = vst [vmem:[%s308 + $0x90] sm:%s300] %v321
              %v323 = vld [vmem:[%s307 + $0xa8] sm:%s300]
              %324 = vst [vmem:[%s308 + $0xa8] sm:%s300] %v323
              %v325 = vld [vmem:[%s307 + $0xc0] sm:%s300]
              %326 = vst [vmem:[%s308 + $0xc0] sm:%s300] %v325
              %v327 = vld [vmem:[%s307 + $0xd8] sm:%s300]
              %328 = vst [vmem:[%s308 + $0xd8] sm:%s300] %v327
              %v329 = vld [vmem:[%s307 + $0xf0] sm:%s300]
              %330 = vst [vmem:[%s308 + $0xf0] sm:%s300] %v329
              %v331 = vld [vmem:[%s307 + $0x108] sm:%s300]
              %332 = vst [vmem:[%s308 + $0x108] sm:%s300] %v331
            $region63: #{tpu_custom_call.1} parent=50 // loop_footer
              %s306 = sadd.s32 1, %s302
            $region64: #{tpu_custom_call.1} parent=50 // loop_footer_branch
              %301 = sbr.rel target = $region60
            $region65: #{tpu_custom_call.1} parent=50 // loop_exit
              _
          $region51: #{tpu_custom_call.1} parent=35 // pred_fallthru
            _
        $region36: #{tpu_custom_call.1} parent=31 // pred_fallthru
          _
        // Predicated region
        $region37: #{tpu_custom_call.1} parent=31 // pred_check
          %p196 = pneg %p192
        $region38: #{tpu_custom_call.1} parent=31 // pred_check_branch
          %198 = sbr.rel (%p196) target = $region40
        $region39: #{tpu_custom_call.1} parent=31 // pred_region
          %s199 = sshll.u32 1, 20
          %s200 = ssub.s32 %s199, 1
          loop: start=0, step=1, limit=1
          $region41: #{tpu_custom_call.1} parent=39 // loop_pre_header
            _
          $region42: #{tpu_custom_call.1} parent=39 // loop_header
            %s202 = sphi 0, %s206
            %p203 = scmp.ge.s32.totalorder %s202, 1
            %s207 = sphi %s190, %s190
            %s208 = sphi [#allocation2], [#allocation2]
          $region43: #{tpu_custom_call.1} parent=39 // loop_header_branch
            %205 = sbr.rel (%p203) target = $region47
          $region44: #{tpu_custom_call.1} parent=39 // loop_body
            %v209 = vld [vmem:[%s207] sm:%s200]
            %210 = vst [vmem:[%s208] sm:%s200] %v209
            %v211 = vld [vmem:[%s207 + $0x18] sm:%s200]
            %212 = vst [vmem:[%s208 + $0x18] sm:%s200] %v211
            %v213 = vld [vmem:[%s207 + $0x30] sm:%s200]
            %214 = vst [vmem:[%s208 + $0x30] sm:%s200] %v213
            %v215 = vld [vmem:[%s207 + $0x48] sm:%s200]
            %216 = vst [vmem:[%s208 + $0x48] sm:%s200] %v215
            %v217 = vld [vmem:[%s207 + $0x60] sm:%s200]
            %218 = vst [vmem:[%s208 + $0x60] sm:%s200] %v217
            %v219 = vld [vmem:[%s207 + $0x78] sm:%s200]
            %220 = vst [vmem:[%s208 + $0x78] sm:%s200] %v219
            %v221 = vld [vmem:[%s207 + $0x90] sm:%s200]
            %222 = vst [vmem:[%s208 + $0x90] sm:%s200] %v221
            %v223 = vld [vmem:[%s207 + $0xa8] sm:%s200]
            %224 = vst [vmem:[%s208 + $0xa8] sm:%s200] %v223
            %v225 = vld [vmem:[%s207 + $0xc0] sm:%s200]
            %226 = vst [vmem:[%s208 + $0xc0] sm:%s200] %v225
            %v227 = vld [vmem:[%s207 + $0xd8] sm:%s200]
            %228 = vst [vmem:[%s208 + $0xd8] sm:%s200] %v227
            %v229 = vld [vmem:[%s207 + $0xf0] sm:%s200]
            %230 = vst [vmem:[%s208 + $0xf0] sm:%s200] %v229
            %v231 = vld [vmem:[%s207 + $0x108] sm:%s200]
            %232 = vst [vmem:[%s208 + $0x108] sm:%s200] %v231
          $region45: #{tpu_custom_call.1} parent=39 // loop_footer
            %s206 = sadd.s32 1, %s202
          $region46: #{tpu_custom_call.1} parent=39 // loop_footer_branch
            %201 = sbr.rel target = $region42
          $region47: #{tpu_custom_call.1} parent=39 // loop_exit
            _
        $region40: #{tpu_custom_call.1} parent=31 // pred_fallthru
          _
        // Predicated region
        $region66: #{tpu_custom_call.1} parent=31 // pred_check
          _
        $region67: #{tpu_custom_call.1} parent=31 // pred_check_branch
          %335 = sbr.rel (0) target = $region69
        $region68: #{tpu_custom_call.1} parent=31 // pred_region
          %336 = vsyncadd [#allocation3], 3840
        $region69: #{tpu_custom_call.1} parent=31 // pred_fallthru
          _
        %s337 = smul.u32 12, 20
        %s338 = smul.u32 %s337, 1
        %s339 = sshll.u32 %s338, 4
        %340 = dma.done [#allocation3], %s339
        %v341 = vld [vmem:[#allocation2] sm:$0xff]
        %v342 = vld [vmem:[#allocation2 + $0x8] sm:$0xff]
        %v343 = vld [vmem:[#allocation2 + $0x18] sm:$0xff]
        %v344 = vld [vmem:[#allocation2 + $0x20] sm:$0xff]
        %v345 = vld [vmem:[#allocation2 + $0x30] sm:$0xff]
        %v346 = vld [vmem:[#allocation2 + $0x38] sm:$0xff]
        %v347 = vld [vmem:[#allocation2 + $0x48] sm:$0xff]
        %v348 = vld [vmem:[#allocation2 + $0x50] sm:$0xff]
        %v349 = vld [vmem:[#allocation2 + $0x60] sm:$0xff]
        %v350 = vld [vmem:[#allocation2 + $0x68] sm:$0xff]
        %v351 = vld [vmem:[#allocation2 + $0x78] sm:$0xff]
        %v352 = vld [vmem:[#allocation2 + $0x80] sm:$0xff]
        %v353 = vld [vmem:[#allocation2 + $0x90] sm:$0xff]
        %v354 = vld [vmem:[#allocation2 + $0x98] sm:$0xff]
        %v355 = vld [vmem:[#allocation2 + $0xa8] sm:$0xff]
        %v356 = vld [vmem:[#allocation2 + $0xb0] sm:$0xff]
        %v357 = vlaneseq
        %v358 = vshrl.u32 %v357, 7
        %v359 = vsub.s32 0, %v358
        %v360 = vrot.slane %v167, %v359
        %v361 = vmul.f32 %v341, %v360
        %v362 = vmul.f32 %v342, %v360
        %v363 = vmul.f32 %v343, %v360
        %v364 = vmul.f32 %v344, %v360
        %v365 = vmul.f32 %v345, %v360
        %v366 = vmul.f32 %v346, %v360
        %v367 = vmul.f32 %v347, %v360
        %v368 = vmul.f32 %v348, %v360
        %v369 = vmul.f32 %v349, %v360
        %v370 = vmul.f32 %v350, %v360
        %v371 = vmul.f32 %v351, %v360
        %v372 = vmul.f32 %v352, %v360
        %v373 = vmul.f32 %v353, %v360
        %v374 = vmul.f32 %v354, %v360
        %v375 = vmul.f32 %v355, %v360
        %v376 = vmul.f32 %v356, %v360
        %v377 = vadd.f32 %v361, 0.0
        %v378 = vadd.f32 %v362, 0.0
        %v379 = vadd.f32 %v363, 0.0
        %v380 = vadd.f32 %v364, 0.0
        %v381 = vadd.f32 %v365, 0.0
        %v382 = vadd.f32 %v366, 0.0
        %v383 = vadd.f32 %v367, 0.0
        %v384 = vadd.f32 %v368, 0.0
        %v385 = vadd.f32 %v369, 0.0
        %v386 = vadd.f32 %v370, 0.0
        %v387 = vadd.f32 %v371, 0.0
        %v388 = vadd.f32 %v372, 0.0
        %v389 = vadd.f32 %v373, 0.0
        %v390 = vadd.f32 %v374, 0.0
        %v391 = vadd.f32 %v375, 0.0
        %v392 = vadd.f32 %v376, 0.0
        %v393 = vld [vmem:[#allocation2 + $0x2] sm:$0xff]
        %v394 = vld [vmem:[#allocation2 + $0xa] sm:$0xff]
        %v395 = vld [vmem:[#allocation2 + $0x1a] sm:$0xff]
        %v396 = vld [vmem:[#allocation2 + $0x22] sm:$0xff]
        %v397 = vld [vmem:[#allocation2 + $0x32] sm:$0xff]
        %v398 = vld [vmem:[#allocation2 + $0x3a] sm:$0xff]
        %v399 = vld [vmem:[#allocation2 + $0x4a] sm:$0xff]
        %v400 = vld [vmem:[#allocation2 + $0x52] sm:$0xff]
        %v401 = vld [vmem:[#allocation2 + $0x62] sm:$0xff]
        %v402 = vld [vmem:[#allocation2 + $0x6a] sm:$0xff]
        %v403 = vld [vmem:[#allocation2 + $0x7a] sm:$0xff]
        %v404 = vld [vmem:[#allocation2 + $0x82] sm:$0xff]
        %v405 = vld [vmem:[#allocation2 + $0x92] sm:$0xff]
        %v406 = vld [vmem:[#allocation2 + $0x9a] sm:$0xff]
        %v407 = vld [vmem:[#allocation2 + $0xaa] sm:$0xff]
        %v408 = vld [vmem:[#allocation2 + $0xb2] sm:$0xff]
        %v409 = vlaneseq
        %v410 = vshrl.u32 %v409, 7
        %v411 = vsub.s32 1, %v410
        %v412 = vrot.slane %v167, %v411
        %v413 = vmul.f32 %v393, %v412
        %v414 = vmul.f32 %v394, %v412
        %v415 = vmul.f32 %v395, %v412
        %v416 = vmul.f32 %v396, %v412
        %v417 = vmul.f32 %v397, %v412
        %v418 = vmul.f32 %v398, %v412
        %v419 = vmul.f32 %v399, %v412
        %v420 = vmul.f32 %v400, %v412
        %v421 = vmul.f32 %v401, %v412
        %v422 = vmul.f32 %v402, %v412
        %v423 = vmul.f32 %v403, %v412
        %v424 = vmul.f32 %v404, %v412
        %v425 = vmul.f32 %v405, %v412
        %v426 = vmul.f32 %v406, %v412
        %v427 = vmul.f32 %v407, %v412
        %v428 = vmul.f32 %v408, %v412
        %v429 = vadd.f32 %v377, %v413
        %v430 = vadd.f32 %v378, %v414
        %v431 = vadd.f32 %v379, %v415
        %v432 = vadd.f32 %v380, %v416
        %v433 = vadd.f32 %v381, %v417
        %v434 = vadd.f32 %v382, %v418
        %v435 = vadd.f32 %v383, %v419
        %v436 = vadd.f32 %v384, %v420
        %v437 = vadd.f32 %v385, %v421
        %v438 = vadd.f32 %v386, %v422
        %v439 = vadd.f32 %v387, %v423
        %v440 = vadd.f32 %v388, %v424
        %v441 = vadd.f32 %v389, %v425
        %v442 = vadd.f32 %v390, %v426
        %v443 = vadd.f32 %v391, %v427
        %v444 = vadd.f32 %v392, %v428
        %v445 = vld [vmem:[#allocation2 + $0x4] sm:$0xff]
        %v446 = vld [vmem:[#allocation2 + $0xc] sm:$0xff]
        %v447 = vld [vmem:[#allocation2 + $0x1c] sm:$0xff]
        %v448 = vld [vmem:[#allocation2 + $0x24] sm:$0xff]
        %v449 = vld [vmem:[#allocation2 + $0x34] sm:$0xff]
        %v450 = vld [vmem:[#allocation2 + $0x3c] sm:$0xff]
        %v451 = vld [vmem:[#allocation2 + $0x4c] sm:$0xff]
        %v452 = vld [vmem:[#allocation2 + $0x54] sm:$0xff]
        %v453 = vld [vmem:[#allocation2 + $0x64] sm:$0xff]
        %v454 = vld [vmem:[#allocation2 + $0x6c] sm:$0xff]
        %v455 = vld [vmem:[#allocation2 + $0x7c] sm:$0xff]
        %v456 = vld [vmem:[#allocation2 + $0x84] sm:$0xff]
        %v457 = vld [vmem:[#allocation2 + $0x94] sm:$0xff]
        %v458 = vld [vmem:[#allocation2 + $0x9c] sm:$0xff]
        %v459 = vld [vmem:[#allocation2 + $0xac] sm:$0xff]
        %v460 = vld [vmem:[#allocation2 + $0xb4] sm:$0xff]
        %v461 = vlaneseq
        %v462 = vshrl.u32 %v461, 7
        %v463 = vsub.s32 2, %v462
        %v464 = vrot.slane %v167, %v463
        %v465 = vmul.f32 %v445, %v464
        %v466 = vmul.f32 %v446, %v464
        %v467 = vmul.f32 %v447, %v464
        %v468 = vmul.f32 %v448, %v464
        %v469 = vmul.f32 %v449, %v464
        %v470 = vmul.f32 %v450, %v464
        %v471 = vmul.f32 %v451, %v464
        %v472 = vmul.f32 %v452, %v464
        %v473 = vmul.f32 %v453, %v464
        %v474 = vmul.f32 %v454, %v464
        %v475 = vmul.f32 %v455, %v464
        %v476 = vmul.f32 %v456, %v464
        %v477 = vmul.f32 %v457, %v464
        %v478 = vmul.f32 %v458, %v464
        %v479 = vmul.f32 %v459, %v464
        %v480 = vmul.f32 %v460, %v464
        %v481 = vadd.f32 %v429, %v465
        %v482 = vadd.f32 %v430, %v466
        %v483 = vadd.f32 %v431, %v467
        %v484 = vadd.f32 %v432, %v468
        %v485 = vadd.f32 %v433, %v469
        %v486 = vadd.f32 %v434, %v470
        %v487 = vadd.f32 %v435, %v471
        %v488 = vadd.f32 %v436, %v472
        %v489 = vadd.f32 %v437, %v473
        %v490 = vadd.f32 %v438, %v474
        %v491 = vadd.f32 %v439, %v475
        %v492 = vadd.f32 %v440, %v476
        %v493 = vadd.f32 %v441, %v477
        %v494 = vadd.f32 %v442, %v478
        %v495 = vadd.f32 %v443, %v479
        %v496 = vadd.f32 %v444, %v480
        %s497 = scalar_lea.vmem [#allocation2], 48
        %v498 = vld [vmem:[%s497] sm:$0xff]
        %v499 = vld [vmem:[%s497 + $0x8] sm:$0xff]
        %v500 = vld [vmem:[%s497 + $0x18] sm:$0xff]
        %v501 = vld [vmem:[%s497 + $0x20] sm:$0xff]
        %v502 = vld [vmem:[%s497 + $0x30] sm:$0xff]
        %v503 = vld [vmem:[%s497 + $0x38] sm:$0xff]
        %v504 = vld [vmem:[%s497 + $0x48] sm:$0xff]
        %v505 = vld [vmem:[%s497 + $0x50] sm:$0xff]
        %v506 = vld [vmem:[%s497 + $0x60] sm:$0xff]
        %v507 = vld [vmem:[%s497 + $0x68] sm:$0xff]
        %v508 = vld [vmem:[%s497 + $0x78] sm:$0xff]
        %v509 = vld [vmem:[%s497 + $0x80] sm:$0xff]
        %v510 = vld [vmem:[%s497 + $0x90] sm:$0xff]
        %v511 = vld [vmem:[%s497 + $0x98] sm:$0xff]
        %v512 = vld [vmem:[%s497 + $0xa8] sm:$0xff]
        %v513 = vld [vmem:[%s497 + $0xb0] sm:$0xff]
        %v514 = vlaneseq
        %v515 = vshrl.u32 %v514, 7
        %v516 = vsub.s32 0, %v515
        %v517 = vrot.slane %v168, %v516
        %v518 = vmul.f32 %v498, %v517
        %v519 = vmul.f32 %v499, %v517
        %v520 = vmul.f32 %v500, %v517
        %v521 = vmul.f32 %v501, %v517
        %v522 = vmul.f32 %v502, %v517
        %v523 = vmul.f32 %v503, %v517
        %v524 = vmul.f32 %v504, %v517
        %v525 = vmul.f32 %v505, %v517
        %v526 = vmul.f32 %v506, %v517
        %v527 = vmul.f32 %v507, %v517
        %v528 = vmul.f32 %v508, %v517
        %v529 = vmul.f32 %v509, %v517
        %v530 = vmul.f32 %v510, %v517
        %v531 = vmul.f32 %v511, %v517
        %v532 = vmul.f32 %v512, %v517
        %v533 = vmul.f32 %v513, %v517
        %v534 = vadd.f32 %v481, %v518
        %v535 = vadd.f32 %v482, %v519
        %v536 = vadd.f32 %v483, %v520
        %v537 = vadd.f32 %v484, %v521
        %v538 = vadd.f32 %v485, %v522
        %v539 = vadd.f32 %v486, %v523
        %v540 = vadd.f32 %v487, %v524
        %v541 = vadd.f32 %v488, %v525
        %v542 = vadd.f32 %v489, %v526
        %v543 = vadd.f32 %v490, %v527
        %v544 = vadd.f32 %v491, %v528
        %v545 = vadd.f32 %v492, %v529
        %v546 = vadd.f32 %v493, %v530
        %v547 = vadd.f32 %v494, %v531
        %v548 = vadd.f32 %v495, %v532
        %v549 = vadd.f32 %v496, %v533
        %v550 = vld [vmem:[%s497 + $0x2] sm:$0xff]
        %v551 = vld [vmem:[%s497 + $0xa] sm:$0xff]
        %v552 = vld [vmem:[%s497 + $0x1a] sm:$0xff]
        %v553 = vld [vmem:[%s497 + $0x22] sm:$0xff]
        %v554 = vld [vmem:[%s497 + $0x32] sm:$0xff]
        %v555 = vld [vmem:[%s497 + $0x3a] sm:$0xff]
        %v556 = vld [vmem:[%s497 + $0x4a] sm:$0xff]
        %v557 = vld [vmem:[%s497 + $0x52] sm:$0xff]
        %v558 = vld [vmem:[%s497 + $0x62] sm:$0xff]
        %v559 = vld [vmem:[%s497 + $0x6a] sm:$0xff]
        %v560 = vld [vmem:[%s497 + $0x7a] sm:$0xff]
        %v561 = vld [vmem:[%s497 + $0x82] sm:$0xff]
        %v562 = vld [vmem:[%s497 + $0x92] sm:$0xff]
        %v563 = vld [vmem:[%s497 + $0x9a] sm:$0xff]
        %v564 = vld [vmem:[%s497 + $0xaa] sm:$0xff]
        %v565 = vld [vmem:[%s497 + $0xb2] sm:$0xff]
        %v566 = vlaneseq
        %v567 = vshrl.u32 %v566, 7
        %v568 = vsub.s32 1, %v567
        %v569 = vrot.slane %v168, %v568
        %v570 = vmul.f32 %v550, %v569
        %v571 = vmul.f32 %v551, %v569
        %v572 = vmul.f32 %v552, %v569
        %v573 = vmul.f32 %v553, %v569
        %v574 = vmul.f32 %v554, %v569
        %v575 = vmul.f32 %v555, %v569
        %v576 = vmul.f32 %v556, %v569
        %v577 = vmul.f32 %v557, %v569
        %v578 = vmul.f32 %v558, %v569
        %v579 = vmul.f32 %v559, %v569
        %v580 = vmul.f32 %v560, %v569
        %v581 = vmul.f32 %v561, %v569
        %v582 = vmul.f32 %v562, %v569
        %v583 = vmul.f32 %v563, %v569
        %v584 = vmul.f32 %v564, %v569
        %v585 = vmul.f32 %v565, %v569
        %v586 = vadd.f32 %v534, %v570
        %v587 = vadd.f32 %v535, %v571
        %v588 = vadd.f32 %v536, %v572
        %v589 = vadd.f32 %v537, %v573
        %v590 = vadd.f32 %v538, %v574
        %v591 = vadd.f32 %v539, %v575
        %v592 = vadd.f32 %v540, %v576
        %v593 = vadd.f32 %v541, %v577
        %v594 = vadd.f32 %v542, %v578
        %v595 = vadd.f32 %v543, %v579
        %v596 = vadd.f32 %v544, %v580
        %v597 = vadd.f32 %v545, %v581
        %v598 = vadd.f32 %v546, %v582
        %v599 = vadd.f32 %v547, %v583
        %v600 = vadd.f32 %v548, %v584
        %v601 = vadd.f32 %v549, %v585
        %v602 = vld [vmem:[%s497 + $0x4] sm:$0xff]
        %v603 = vld [vmem:[%s497 + $0xc] sm:$0xff]
        %v604 = vld [vmem:[%s497 + $0x1c] sm:$0xff]
        %v605 = vld [vmem:[%s497 + $0x24] sm:$0xff]
        %v606 = vld [vmem:[%s497 + $0x34] sm:$0xff]
        %v607 = vld [vmem:[%s497 + $0x3c] sm:$0xff]
        %v608 = vld [vmem:[%s497 + $0x4c] sm:$0xff]
        %v609 = vld [vmem:[%s497 + $0x54] sm:$0xff]
        %v610 = vld [vmem:[%s497 + $0x64] sm:$0xff]
        %v611 = vld [vmem:[%s497 + $0x6c] sm:$0xff]
        %v612 = vld [vmem:[%s497 + $0x7c] sm:$0xff]
        %v613 = vld [vmem:[%s497 + $0x84] sm:$0xff]
        %v614 = vld [vmem:[%s497 + $0x94] sm:$0xff]
        %v615 = vld [vmem:[%s497 + $0x9c] sm:$0xff]
        %v616 = vld [vmem:[%s497 + $0xac] sm:$0xff]
        %v617 = vld [vmem:[%s497 + $0xb4] sm:$0xff]
        %v618 = vlaneseq
        %v619 = vshrl.u32 %v618, 7
        %v620 = vsub.s32 2, %v619
        %v621 = vrot.slane %v168, %v620
        %v622 = vmul.f32 %v602, %v621
        %v623 = vmul.f32 %v603, %v621
        %v624 = vmul.f32 %v604, %v621
        %v625 = vmul.f32 %v605, %v621
        %v626 = vmul.f32 %v606, %v621
        %v627 = vmul.f32 %v607, %v621
        %v628 = vmul.f32 %v608, %v621
        %v629 = vmul.f32 %v609, %v621
        %v630 = vmul.f32 %v610, %v621
        %v631 = vmul.f32 %v611, %v621
        %v632 = vmul.f32 %v612, %v621
        %v633 = vmul.f32 %v613, %v621
        %v634 = vmul.f32 %v614, %v621
        %v635 = vmul.f32 %v615, %v621
        %v636 = vmul.f32 %v616, %v621
        %v637 = vmul.f32 %v617, %v621
        %v638 = vadd.f32 %v586, %v622
        %v639 = vadd.f32 %v587, %v623
        %v640 = vadd.f32 %v588, %v624
        %v641 = vadd.f32 %v589, %v625
        %v642 = vadd.f32 %v590, %v626
        %v643 = vadd.f32 %v591, %v627
        %v644 = vadd.f32 %v592, %v628
        %v645 = vadd.f32 %v593, %v629
        %v646 = vadd.f32 %v594, %v630
        %v647 = vadd.f32 %v595, %v631
        %v648 = vadd.f32 %v596, %v632
        %v649 = vadd.f32 %v597, %v633
        %v650 = vadd.f32 %v598, %v634
        %v651 = vadd.f32 %v599, %v635
        %v652 = vadd.f32 %v600, %v636
        %v653 = vadd.f32 %v601, %v637
        %s654 = scalar_lea.vmem [#allocation2], 96
        %v655 = vld [vmem:[%s654] sm:$0xff]
        %v656 = vld [vmem:[%s654 + $0x8] sm:$0xff]
        %v657 = vld [vmem:[%s654 + $0x18] sm:$0xff]
        %v658 = vld [vmem:[%s654 + $0x20] sm:$0xff]
        %v659 = vld [vmem:[%s654 + $0x30] sm:$0xff]
        %v660 = vld [vmem:[%s654 + $0x38] sm:$0xff]
        %v661 = vld [vmem:[%s654 + $0x48] sm:$0xff]
        %v662 = vld [vmem:[%s654 + $0x50] sm:$0xff]
        %v663 = vld [vmem:[%s654 + $0x60] sm:$0xff]
        %v664 = vld [vmem:[%s654 + $0x68] sm:$0xff]
        %v665 = vld [vmem:[%s654 + $0x78] sm:$0xff]
        %v666 = vld [vmem:[%s654 + $0x80] sm:$0xff]
        %v667 = vld [vmem:[%s654 + $0x90] sm:$0xff]
        %v668 = vld [vmem:[%s654 + $0x98] sm:$0xff]
        %v669 = vld [vmem:[%s654 + $0xa8] sm:$0xff]
        %v670 = vld [vmem:[%s654 + $0xb0] sm:$0xff]
        %v671 = vlaneseq
        %v672 = vshrl.u32 %v671, 7
        %v673 = vsub.s32 0, %v672
        %v674 = vrot.slane %v169, %v673
        %v675 = vmul.f32 %v655, %v674
        %v676 = vmul.f32 %v656, %v674
        %v677 = vmul.f32 %v657, %v674
        %v678 = vmul.f32 %v658, %v674
        %v679 = vmul.f32 %v659, %v674
        %v680 = vmul.f32 %v660, %v674
        %v681 = vmul.f32 %v661, %v674
        %v682 = vmul.f32 %v662, %v674
        %v683 = vmul.f32 %v663, %v674
        %v684 = vmul.f32 %v664, %v674
        %v685 = vmul.f32 %v665, %v674
        %v686 = vmul.f32 %v666, %v674
        %v687 = vmul.f32 %v667, %v674
        %v688 = vmul.f32 %v668, %v674
        %v689 = vmul.f32 %v669, %v674
        %v690 = vmul.f32 %v670, %v674
        %v691 = vadd.f32 %v638, %v675
        %v692 = vadd.f32 %v639, %v676
        %v693 = vadd.f32 %v640, %v677
        %v694 = vadd.f32 %v641, %v678
        %v695 = vadd.f32 %v642, %v679
        %v696 = vadd.f32 %v643, %v680
        %v697 = vadd.f32 %v644, %v681
        %v698 = vadd.f32 %v645, %v682
        %v699 = vadd.f32 %v646, %v683
        %v700 = vadd.f32 %v647, %v684
        %v701 = vadd.f32 %v648, %v685
        %v702 = vadd.f32 %v649, %v686
        %v703 = vadd.f32 %v650, %v687
        %v704 = vadd.f32 %v651, %v688
        %v705 = vadd.f32 %v652, %v689
        %v706 = vadd.f32 %v653, %v690
        %v707 = vld [vmem:[%s654 + $0x2] sm:$0xff]
        %v708 = vld [vmem:[%s654 + $0xa] sm:$0xff]
        %v709 = vld [vmem:[%s654 + $0x1a] sm:$0xff]
        %v710 = vld [vmem:[%s654 + $0x22] sm:$0xff]
        %v711 = vld [vmem:[%s654 + $0x32] sm:$0xff]
        %v712 = vld [vmem:[%s654 + $0x3a] sm:$0xff]
        %v713 = vld [vmem:[%s654 + $0x4a] sm:$0xff]
        %v714 = vld [vmem:[%s654 + $0x52] sm:$0xff]
        %v715 = vld [vmem:[%s654 + $0x62] sm:$0xff]
        %v716 = vld [vmem:[%s654 + $0x6a] sm:$0xff]
        %v717 = vld [vmem:[%s654 + $0x7a] sm:$0xff]
        %v718 = vld [vmem:[%s654 + $0x82] sm:$0xff]
        %v719 = vld [vmem:[%s654 + $0x92] sm:$0xff]
        %v720 = vld [vmem:[%s654 + $0x9a] sm:$0xff]
        %v721 = vld [vmem:[%s654 + $0xaa] sm:$0xff]
        %v722 = vld [vmem:[%s654 + $0xb2] sm:$0xff]
        %v723 = vlaneseq
        %v724 = vshrl.u32 %v723, 7
        %v725 = vsub.s32 1, %v724
        %v726 = vrot.slane %v169, %v725
        %v727 = vmul.f32 %v707, %v726
        %v728 = vmul.f32 %v708, %v726
        %v729 = vmul.f32 %v709, %v726
        %v730 = vmul.f32 %v710, %v726
        %v731 = vmul.f32 %v711, %v726
        %v732 = vmul.f32 %v712, %v726
        %v733 = vmul.f32 %v713, %v726
        %v734 = vmul.f32 %v714, %v726
        %v735 = vmul.f32 %v715, %v726
        %v736 = vmul.f32 %v716, %v726
        %v737 = vmul.f32 %v717, %v726
        %v738 = vmul.f32 %v718, %v726
        %v739 = vmul.f32 %v719, %v726
        %v740 = vmul.f32 %v720, %v726
        %v741 = vmul.f32 %v721, %v726
        %v742 = vmul.f32 %v722, %v726
        %v743 = vadd.f32 %v691, %v727
        %v744 = vadd.f32 %v692, %v728
        %v745 = vadd.f32 %v693, %v729
        %v746 = vadd.f32 %v694, %v730
        %v747 = vadd.f32 %v695, %v731
        %v748 = vadd.f32 %v696, %v732
        %v749 = vadd.f32 %v697, %v733
        %v750 = vadd.f32 %v698, %v734
        %v751 = vadd.f32 %v699, %v735
        %v752 = vadd.f32 %v700, %v736
        %v753 = vadd.f32 %v701, %v737
        %v754 = vadd.f32 %v702, %v738
        %v755 = vadd.f32 %v703, %v739
        %v756 = vadd.f32 %v704, %v740
        %v757 = vadd.f32 %v705, %v741
        %v758 = vadd.f32 %v706, %v742
        %v759 = vld [vmem:[%s654 + $0x4] sm:$0xff]
        %v760 = vld [vmem:[%s654 + $0xc] sm:$0xff]
        %v761 = vld [vmem:[%s654 + $0x1c] sm:$0xff]
        %v762 = vld [vmem:[%s654 + $0x24] sm:$0xff]
        %v763 = vld [vmem:[%s654 + $0x34] sm:$0xff]
        %v764 = vld [vmem:[%s654 + $0x3c] sm:$0xff]
        %v765 = vld [vmem:[%s654 + $0x4c] sm:$0xff]
        %v766 = vld [vmem:[%s654 + $0x54] sm:$0xff]
        %v767 = vld [vmem:[%s654 + $0x64] sm:$0xff]
        %v768 = vld [vmem:[%s654 + $0x6c] sm:$0xff]
        %v769 = vld [vmem:[%s654 + $0x7c] sm:$0xff]
        %v770 = vld [vmem:[%s654 + $0x84] sm:$0xff]
        %v771 = vld [vmem:[%s654 + $0x94] sm:$0xff]
        %v772 = vld [vmem:[%s654 + $0x9c] sm:$0xff]
        %v773 = vld [vmem:[%s654 + $0xac] sm:$0xff]
        %v774 = vld [vmem:[%s654 + $0xb4] sm:$0xff]
        %v775 = vlaneseq
        %v776 = vshrl.u32 %v775, 7
        %v777 = vsub.s32 2, %v776
        %v778 = vrot.slane %v169, %v777
        %v779 = vmul.f32 %v759, %v778
        %v780 = vmul.f32 %v760, %v778
        %v781 = vmul.f32 %v761, %v778
        %v782 = vmul.f32 %v762, %v778
        %v783 = vmul.f32 %v763, %v778
        %v784 = vmul.f32 %v764, %v778
        %v785 = vmul.f32 %v765, %v778
        %v786 = vmul.f32 %v766, %v778
        %v787 = vmul.f32 %v767, %v778
        %v788 = vmul.f32 %v768, %v778
        %v789 = vmul.f32 %v769, %v778
        %v790 = vmul.f32 %v770, %v778
        %v791 = vmul.f32 %v771, %v778
        %v792 = vmul.f32 %v772, %v778
        %v793 = vmul.f32 %v773, %v778
        %v794 = vmul.f32 %v774, %v778
        %v795 = vadd.f32 %v743, %v779
        %v796 = vadd.f32 %v744, %v780
        %v797 = vadd.f32 %v745, %v781
        %v798 = vadd.f32 %v746, %v782
        %v799 = vadd.f32 %v747, %v783
        %v800 = vadd.f32 %v748, %v784
        %v801 = vadd.f32 %v749, %v785
        %v802 = vadd.f32 %v750, %v786
        %v803 = vadd.f32 %v751, %v787
        %v804 = vadd.f32 %v752, %v788
        %v805 = vadd.f32 %v753, %v789
        %v806 = vadd.f32 %v754, %v790
        %v807 = vadd.f32 %v755, %v791
        %v808 = vadd.f32 %v756, %v792
        %v809 = vadd.f32 %v757, %v793
        %v810 = vadd.f32 %v758, %v794
        %v812 = vlaneseq
        %v813 = vshrl.u32 %v812, 7
        %v814 = vsub.s32 0, %v813
        %v815 = vrot.slane %v170, %v814
        %v817 = vadd.f32 %v795, %v815
        %v818 = vadd.f32 %v796, %v815
        %v819 = vadd.f32 %v797, %v815
        %v820 = vadd.f32 %v798, %v815
        %v821 = vadd.f32 %v799, %v815
        %v822 = vadd.f32 %v800, %v815
        %v823 = vadd.f32 %v801, %v815
        %v824 = vadd.f32 %v802, %v815
        %v825 = vadd.f32 %v803, %v815
        %v826 = vadd.f32 %v804, %v815
        %v827 = vadd.f32 %v805, %v815
        %v828 = vadd.f32 %v806, %v815
        %v829 = vadd.f32 %v807, %v815
        %v830 = vadd.f32 %v808, %v815
        %v831 = vadd.f32 %v809, %v815
        %v832 = vadd.f32 %v810, %v815
        %v833 = vmax.f32 %v817, 0.0
        %v834 = vmax.f32 %v818, 0.0
        %v835 = vmax.f32 %v819, 0.0
        %v836 = vmax.f32 %v820, 0.0
        %v837 = vmax.f32 %v821, 0.0
        %v838 = vmax.f32 %v822, 0.0
        %v839 = vmax.f32 %v823, 0.0
        %v840 = vmax.f32 %v824, 0.0
        %v841 = vmax.f32 %v825, 0.0
        %v842 = vmax.f32 %v826, 0.0
        %v843 = vmax.f32 %v827, 0.0
        %v844 = vmax.f32 %v828, 0.0
        %v845 = vmax.f32 %v829, 0.0
        %v846 = vmax.f32 %v830, 0.0
        %v847 = vmax.f32 %v831, 0.0
        %v848 = vmax.f32 %v832, 0.0
        %v849 = vpack.c.bf16 %v834, %v833
        %v850 = vpack.c.bf16 %v836, %v835
        %v851 = vpack.c.bf16 %v838, %v837
        %v852 = vpack.c.bf16 %v840, %v839
        %v853 = vpack.c.bf16 %v842, %v841
        %v854 = vpack.c.bf16 %v844, %v843
        %v855 = vpack.c.bf16 %v846, %v845
        %v856 = vpack.c.bf16 %v848, %v847
        %v873 = vunpack.c.l.b16 %v171
        %v874 = vunpack.c.l.b16 %v172
        %v875 = vunpack.c.l.b16 %v173
        %v876 = vunpack.c.l.b16 %v174
        %v877 = vunpack.c.l.b16 %v175
        %v878 = vunpack.c.l.b16 %v176
        %v879 = vunpack.c.l.b16 %v177
        %v880 = vunpack.c.l.b16 %v178
        %v881 = vunpack.c.l.b16 %v179
        %v882 = vunpack.c.l.b16 %v180
        %v883 = vunpack.c.l.b16 %v181
        %v884 = vunpack.c.l.b16 %v182
        %v885 = vunpack.c.l.b16 %v183
        %v886 = vunpack.c.l.b16 %v184
        %v887 = vunpack.c.l.b16 %v185
        %v888 = vunpack.c.l.b16 %v186
        %v889 = vpack.c.b16 %v874, %v873
        %v890 = vpack.c.b16 %v876, %v875
        %v891 = vpack.c.b16 %v878, %v877
        %v892 = vpack.c.b16 %v880, %v879
        %v893 = vpack.c.b16 %v882, %v881
        %v894 = vpack.c.b16 %v884, %v883
        %v895 = vpack.c.b16 %v886, %v885
        %v896 = vpack.c.b16 %v888, %v887
        %905 = vmatprep.subr.bf16.mxu0 0
        %906 = vmatpush1.bf16.msra.mxu0 %v896
        %907 = vmatprep.subr.bf16.mxu0 0
        %908 = vmatpush1.bf16.msra.mxu0 %v895
        %909 = vmatprep.subr.bf16.mxu0 0
        %910 = vmatpush1.bf16.msra.mxu0 %v894
        %911 = vmatprep.subr.bf16.mxu0 0
        %912 = vmatpush1.bf16.msra.mxu0 %v893
        %913 = vmatprep.subr.bf16.mxu0 0
        %914 = vmatpush1.bf16.msra.mxu0 %v892
        %915 = vmatprep.subr.bf16.mxu0 0
        %916 = vmatpush1.bf16.msra.mxu0 %v891
        %917 = vmatprep.subr.bf16.mxu0 0
        %918 = vmatpush1.bf16.msra.mxu0 %v890
        %919 = vmatprep.subr.bf16.mxu0 0
        %920 = vmatpush1.bf16.msra.mxu0 %v889
        %921 = vmatprep.subr.bf16.mxu0 0
        %922 = vmatpush2.bf16.msra.mxu0 0
        %923 = vmatprep.subr.bf16.mxu0 0
        %924 = vmatpush2.bf16.msra.mxu0 0
        %925 = vmatprep.subr.bf16.mxu0 0
        %926 = vmatpush2.bf16.msra.mxu0 0
        %927 = vmatprep.subr.bf16.mxu0 0
        %928 = vmatpush2.bf16.msra.mxu0 0
        %929 = vmatprep.subr.bf16.mxu0 0
        %930 = vmatpush2.bf16.msra.mxu0 0
        %931 = vmatprep.subr.bf16.mxu0 0
        %932 = vmatpush2.bf16.msra.mxu0 0
        %933 = vmatprep.subr.bf16.mxu0 0
        %934 = vmatpush2.bf16.msra.mxu0 0
        %935 = vmatprep.subr.bf16.mxu0 0
        %936 = vmatpush2.bf16.msra.mxu0 0
        %937 = vmatprep.mubr.bf16.mxu0 0
        %938 = vmatmul.mubr.bf16.gmra.mxu0 %v849
        %v939 = vpop.f32.mrf.mxu0
        %v940 = vadd.f32 0.0, %v939
        %v941 = vpop.f32.mrf.mxu0
        %v942 = vpop.f32.mrf.mxu0
        %v943 = vadd.f32 0.0, %v942
        %v944 = vpop.f32.mrf.mxu0
        %945 = vmatprep.mubr.bf16.mxu0 0
        %946 = vmatmul.mubr.bf16.gmra.mxu0 %v850
        %v947 = vpop.f32.mrf.mxu0
        %v948 = vadd.f32 0.0, %v947
        %v949 = vpop.f32.mrf.mxu0
        %v950 = vpop.f32.mrf.mxu0
        %v951 = vadd.f32 0.0, %v950
        %v952 = vpop.f32.mrf.mxu0
        %953 = vmatprep.mubr.bf16.mxu0 0
        %954 = vmatmul.mubr.bf16.gmra.mxu0 %v851
        %v955 = vpop.f32.mrf.mxu0
        %v956 = vadd.f32 0.0, %v955
        %v957 = vpop.f32.mrf.mxu0
        %v958 = vpop.f32.mrf.mxu0
        %v959 = vadd.f32 0.0, %v958
        %v960 = vpop.f32.mrf.mxu0
        %961 = vmatprep.mubr.bf16.mxu0 0
        %962 = vmatmul.mubr.bf16.gmra.mxu0 %v852
        %v963 = vpop.f32.mrf.mxu0
        %v964 = vadd.f32 0.0, %v963
        %v965 = vpop.f32.mrf.mxu0
        %v966 = vpop.f32.mrf.mxu0
        %v967 = vadd.f32 0.0, %v966
        %v968 = vpop.f32.mrf.mxu0
        %969 = vmatprep.mubr.bf16.mxu0 0
        %970 = vmatmul.mubr.bf16.gmra.mxu0 %v853
        %v971 = vpop.f32.mrf.mxu0
        %v972 = vadd.f32 0.0, %v971
        %v973 = vpop.f32.mrf.mxu0
        %v974 = vpop.f32.mrf.mxu0
        %v975 = vadd.f32 0.0, %v974
        %v976 = vpop.f32.mrf.mxu0
        %977 = vmatprep.mubr.bf16.mxu0 0
        %978 = vmatmul.mubr.bf16.gmra.mxu0 %v854
        %v979 = vpop.f32.mrf.mxu0
        %v980 = vadd.f32 0.0, %v979
        %v981 = vpop.f32.mrf.mxu0
        %v982 = vpop.f32.mrf.mxu0
        %v983 = vadd.f32 0.0, %v982
        %v984 = vpop.f32.mrf.mxu0
        %985 = vmatprep.mubr.bf16.mxu0 0
        %986 = vmatmul.mubr.bf16.gmra.mxu0 %v855
        %v987 = vpop.f32.mrf.mxu0
        %v988 = vadd.f32 0.0, %v987
        %v989 = vpop.f32.mrf.mxu0
        %v990 = vpop.f32.mrf.mxu0
        %v991 = vadd.f32 0.0, %v990
        %v992 = vpop.f32.mrf.mxu0
        %993 = vmatprep.mubr.bf16.mxu0 0
        %994 = vmatmul.mubr.bf16.gmra.mxu0 %v856
        %v995 = vpop.f32.mrf.mxu0
        %v996 = vadd.f32 0.0, %v995
        %v997 = vpop.f32.mrf.mxu0
        %v998 = vpop.f32.mrf.mxu0
        %v999 = vadd.f32 0.0, %v998
        %v1000 = vpop.f32.mrf.mxu0
        %1001 = vdwg.mxu0
        %1002 = vst [vmem:[%s163] sm:$0xff] %v940
        %1003 = vst [vmem:[%s163 + $0x8] sm:$0xff] %v943
        %1004 = vst [vmem:[%s163 + $0x10] sm:$0xff] %v948
        %1005 = vst [vmem:[%s163 + $0x18] sm:$0xff] %v951
        %1006 = vst [vmem:[%s163 + $0x20] sm:$0xff] %v956
        %1007 = vst [vmem:[%s163 + $0x28] sm:$0xff] %v959
        %1008 = vst [vmem:[%s163 + $0x30] sm:$0xff] %v964
        %1009 = vst [vmem:[%s163 + $0x38] sm:$0xff] %v967
        %1010 = vst [vmem:[%s163 + $0x40] sm:$0xff] %v972
        %1011 = vst [vmem:[%s163 + $0x48] sm:$0xff] %v975
        %1012 = vst [vmem:[%s163 + $0x50] sm:$0xff] %v980
        %1013 = vst [vmem:[%s163 + $0x58] sm:$0xff] %v983
        %1014 = vst [vmem:[%s163 + $0x60] sm:$0xff] %v988
        %1015 = vst [vmem:[%s163 + $0x68] sm:$0xff] %v991
        %1016 = vst [vmem:[%s163 + $0x70] sm:$0xff] %v996
        %1017 = vst [vmem:[%s163 + $0x78] sm:$0xff] %v999
        %s1018 = sand.u32 %s103, 1
        %s1019 = scalar_lea.sflag [#allocation5], %s1018
        %s1020 = sand.u32 %s103, 1
        %s1021 = smul.addr %s1020, 128
        %s1022 = scalar_lea.vmem [#allocation4], %s1021
        // Predicated region
        $region70: #{tpu_custom_call.1} parent=31 // pred_check
          %p1023 = pneg %p113
        $region71: #{tpu_custom_call.1} parent=31 // pred_check_branch
          %1025 = sbr.rel (%p1023) target = $region73
        $region72: #{tpu_custom_call.1} parent=31 // pred_region
          %s1026 = smul.u32 16, %s23
          %s1028 = ssub.s32 2048, 2048
          %1029 = vsyncadd %s1019, %s1028
          %s1030 = smul.addr %s22, 32
          %s1031 = sadd.s32 %s1026, %s1030
          %s1032 = smul.addr %s1031, 128
          %s1033 = scalar_lea.hbm %s4, %s1032
          %s1034 = sshll.u32 %s1022, 4
          %s1035 = int_to_ptr.vmem [resolvable:$true] %s1034
          %1040 = dma.vmem_to_hbm [thread:$0]  %s1035, 2048, %s1033, %s1019, 128, 128, 8
        $region73: #{tpu_custom_call.1} parent=31 // pred_fallthru
          _
      $region32: #{tpu_custom_call.1} parent=5 // pred_fallthru
        _
      %p1041 = scmp.le.s32.totalorder 2, %s13
      // Predicated region
      $region74: #{tpu_custom_call.1} parent=5 // pred_check
        %p1042 = pneg %p1041
      $region75: #{tpu_custom_call.1} parent=5 // pred_check_branch
        %1044 = sbr.rel (%p1042) target = $region77
      $region76: #{tpu_custom_call.1} parent=5 // pred_region
        %s1045 = ssub.s32 %s13, 2
        // Predicated region
        $region78: #{tpu_custom_call.1} parent=76 // pred_check
          %p1046 = pneg %p119
        $region79: #{tpu_custom_call.1} parent=76 // pred_check_branch
          %1048 = sbr.rel (%p1046) target = $region81
        $region80: #{tpu_custom_call.1} parent=76 // pred_region
          %s1049 = sand.u32 %s104, 1
          %s1050 = scalar_lea.sflag [#allocation5], %s1049
          %s1051 = sand.u32 %s104, 1
          %s1052 = smul.addr %s1051, 128
          %s1053 = scalar_lea.vmem [#allocation4], %s1052
          %1054 = dma.done %s1050, 2048
        $region81: #{tpu_custom_call.1} parent=76 // pred_fallthru
          _
      $region77: #{tpu_custom_call.1} parent=5 // pred_fallthru
        _
    $region6: #{tpu_custom_call.1} parent=1 // loop_footer
      %s17 = sadd.s32 1, %s13
    $region7: #{tpu_custom_call.1} parent=1 // loop_footer_branch
      %12 = sbr.rel target = $region3
    $region8: #{tpu_custom_call.1} parent=1 // loop_exit
      _
    %1055 = vsyncpa [#allocation5], 1
    %s1056 = scalar_lea.sflag [#allocation5], 1
    %1057 = vsyncpa %s1056, 1
  %1058 = vsyncmov [#allocation3]
  %s1059 = vpop.sfrf %1058
  %p1060 = scmp.eq.s32.totalorder %s1059, 0
  %p1061 = pneg %p1060
  %1063 = shalt.err (%p1061)
  %s1064 = scalar_lea.sflag [#allocation3], 1
  %1065 = vsyncmov %s1064
  %s1066 = vpop.sfrf %1065
  %p1067 = scmp.eq.s32.totalorder %s1066, 0
  %p1068 = pneg %p1067
  %1070 = shalt.err (%p1068)

</llo_original>
